<compile_context>
chip_gen: v6e
topology: v6e:2x2x1
jax: 0.10.0
libtpu: 0.0.40
codegen_flags: <defaults>
</compile_context>

<pallas_src>
import functools

import jax
import jax.numpy as jnp
from jax.experimental import pallas as pl
from jax.experimental.pallas import tpu as pltpu


def _round_up(n, m):
    return ((n + m - 1) // m) * m


def mlp_kernel(x_ref, w1_ref, b1_ref, w2_ref, b2_ref, o_ref, h_ref):
    # fc1: bf16 x @ bf16 W1 on the MXU, f32 accumulate; bias + ReLU in f32 on the VPU.
    h = jnp.dot(x_ref[...], w1_ref[...], preferred_element_type=jnp.float32)
    h = jnp.maximum(h + b1_ref[...], 0.0)
    # Materialize the ReLU activation in a bf16 VMEM scratch and feed fc2 from it,
    # so the second matmul is also a bf16 MXU op.
    h_ref[...] = h.astype(jnp.bfloat16)
    y = jnp.dot(h_ref[...], w2_ref[...], preferred_element_type=jnp.float32)
    o_ref[...] = (y + b2_ref[...]).astype(o_ref.dtype)


@functools.partial(jax.jit, static_argnames=("tm",))
def simple_nn_forward(x, w1, b1, w2, b2, *, tm=128):
    """x: (B, In) f32; w1: (In, H); b1: (H,); w2: (H, Out); b2: (Out,).

    Weights are already in (in_features, out_features) layout, i.e. PyTorch's
    W.T, so the forward is relu(x @ w1 + b1) @ w2 + b2.
    """
    B, In = x.shape
    H = w1.shape[1]
    Out = w2.shape[1]

    # Lane-dense padded dims (multiples of 128) and a sublane-aligned batch tile.
    Inp = _round_up(In, 128)
    Hp = _round_up(H, 128)
    Op = _round_up(Out, 128)
    TM = min(tm, _round_up(B, 8))
    Bp = _round_up(B, TM)

    # Zero-pad + cast matmul operands to bf16 (MXU native); biases stay f32.
    xp = jnp.zeros((Bp, Inp), jnp.bfloat16).at[:B, :In].set(x.astype(jnp.bfloat16))
    w1p = jnp.zeros((Inp, Hp), jnp.bfloat16).at[:In, :H].set(w1.astype(jnp.bfloat16))
    w2p = jnp.zeros((Hp, Op), jnp.bfloat16).at[:H, :Out].set(w2.astype(jnp.bfloat16))
    b1p = jnp.zeros((1, Hp), jnp.float32).at[0, :H].set(b1.astype(jnp.float32))
    b2p = jnp.zeros((1, Op), jnp.float32).at[0, :Out].set(b2.astype(jnp.float32))

    out_padded = pl.pallas_call(
        mlp_kernel,
        out_shape=jax.ShapeDtypeStruct((Bp, Op), jnp.float32),
        grid_spec=pl.GridSpec(
            grid=(pl.cdiv(Bp, TM),),
            in_specs=[
                pl.BlockSpec((TM, Inp), lambda i: (i, 0)),   # x: tiled over batch
                pl.BlockSpec((Inp, Hp), lambda i: (0, 0)),   # W1: resident
                pl.BlockSpec((1, Hp), lambda i: (0, 0)),     # b1: resident
                pl.BlockSpec((Hp, Op), lambda i: (0, 0)),    # W2: resident
                pl.BlockSpec((1, Op), lambda i: (0, 0)),     # b2: resident
            ],
            out_specs=pl.BlockSpec((TM, Op), lambda i: (i, 0)),
            scratch_shapes=[pltpu.VMEM((TM, Hp), jnp.bfloat16)],
        ),
        compiler_params=pltpu.CompilerParams(
            dimension_semantics=("parallel",),
        ),
    )(xp, w1p, b1p, w2p, b2p)

    return out_padded[:B, :Out]


if __name__ == "__main__":
    # Small shapes consistent with SimpleNN(input_dim, hidden_dim, output_dim).
    B, In, H, Out = 8, 32, 64, 16

    key = jax.random.PRNGKey(0)
    kx, kw1, kb1, kw2, kb2 = jax.random.split(key, 5)

    x = jax.random.normal(kx, (B, In), dtype=jnp.float32)

    # PyTorch nn.Linear stores weight as (out, in); sample in that convention then
    # transpose to (in, out) for the kernel.
    w1_torch = jax.random.normal(kw1, (H, In), dtype=jnp.float32) * 0.1
    b1 = jax.random.normal(kb1, (H,), dtype=jnp.float32) * 0.1
    w2_torch = jax.random.normal(kw2, (Out, H), dtype=jnp.float32) * 0.1
    b2 = jax.random.normal(kb2, (Out,), dtype=jnp.float32) * 0.1

    w1 = w1_torch.T  # (In, H)
    w2 = w2_torch.T  # (H, Out)

    out = simple_nn_forward(x, w1, b1, w2, b2)
    out = jax.block_until_ready(out)
    assert out.shape == (B, Out)

    # Reference #1: same bf16-input / f32-accumulate math as the kernel (tight check).
    xb = x.astype(jnp.bfloat16)
    w1b = w1.astype(jnp.bfloat16)
    w2b = w2.astype(jnp.bfloat16)
    hb = jnp.maximum(
        jnp.dot(xb, w1b, preferred_element_type=jnp.float32) + b1, 0.0)
    ref_bf16 = jnp.dot(hb.astype(jnp.bfloat16), w2b,
                       preferred_element_type=jnp.float32) + b2
    assert jnp.allclose(out, ref_bf16, atol=1e-3, rtol=1e-3)

    # Reference #2: full-f32 torch semantics (loose check: bf16 quantization only).
    ref_f32 = jnp.maximum(x @ w1_torch.T + b1, 0.0) @ w2_torch.T + b2
    assert jnp.allclose(out, ref_f32, atol=5e-2, rtol=5e-2)

    print("KERNEL_OK")
</pallas_src>

<mosaic_0001>
module attributes {stable_mosaic.version = 11 : i64} {
  func.func @mlp_kernel(%arg0: i32, %arg1: memref<8x128xbf16, #tpu.memory_space<vmem>>, %arg2: memref<128x128xbf16, #tpu.memory_space<vmem>>, %arg3: memref<1x128xf32, #tpu.memory_space<vmem>>, %arg4: memref<128x128xbf16, #tpu.memory_space<vmem>>, %arg5: memref<1x128xf32, #tpu.memory_space<vmem>>, %arg6: memref<8x128xf32, #tpu.memory_space<vmem>>, %arg7: memref<8x128xbf16, #tpu.memory_space<vmem>>) attributes {dimension_semantics = [#tpu.dimension_semantics<parallel>], iteration_bounds = array<i64: 1>, scalar_prefetch = 0 : i64, scratch_operands = 1 : i64, tpu.core_type = #tpu.core_type<tc>, window_params = [{transform_indices = @transform_0, window_bounds = array<i64: 8, 128>}, {pipeline_mode = #tpu.pipeline_mode<synchronous>, transform_indices = @transform_1, window_bounds = array<i64: 128, 128>}, {pipeline_mode = #tpu.pipeline_mode<synchronous>, transform_indices = @transform_2, window_bounds = array<i64: 1, 128>}, {pipeline_mode = #tpu.pipeline_mode<synchronous>, transform_indices = @transform_3, window_bounds = array<i64: 128, 128>}, {pipeline_mode = #tpu.pipeline_mode<synchronous>, transform_indices = @transform_4, window_bounds = array<i64: 1, 128>}, {transform_indices = @transform_5, window_bounds = array<i64: 8, 128>}]} {
    %c0 = arith.constant 0 : index
    %c0_0 = arith.constant 0 : index
    %0 = vector.load %arg1[%c0, %c0_0] : memref<8x128xbf16, #tpu.memory_space<vmem>>, vector<8x128xbf16>
    %c0_1 = arith.constant 0 : index
    %c0_2 = arith.constant 0 : index
    %1 = vector.load %arg2[%c0_1, %c0_2] : memref<128x128xbf16, #tpu.memory_space<vmem>>, vector<128x128xbf16>
    %cst = arith.constant dense<0.000000e+00> : vector<8x128xf32>
    %2 = tpu.matmul %0, %1, %cst {dimension_numbers = #tpu.dot_dimension_numbers<[1], [0], [0], [1], [0, 0, 1, 1], [], []>} : vector<8x128xbf16>, vector<128x128xbf16>, vector<8x128xf32> -> vector<8x128xf32>
    %c0_3 = arith.constant 0 : index
    %c0_4 = arith.constant 0 : index
    %3 = vector.load %arg3[%c0_3, %c0_4] : memref<1x128xf32, #tpu.memory_space<vmem>>, vector<1x128xf32>
    %4 = vector.broadcast %3 : vector<1x128xf32> to vector<8x128xf32>
    %5 = arith.addf %2, %4 : vector<8x128xf32>
    %cst_5 = arith.constant 0.000000e+00 : f32
    %6 = vector.broadcast %cst_5 : f32 to vector<8x128xf32>
    %7 = arith.maximumf %5, %6 : vector<8x128xf32>
    %8 = arith.truncf %7 : vector<8x128xf32> to vector<8x128xbf16>
    %c0_6 = arith.constant 0 : index
    %c0_7 = arith.constant 0 : index
    %9 = vector.load %arg7[%c0_6, %c0_7] : memref<8x128xbf16, #tpu.memory_space<vmem>>, vector<8x128xbf16>
    tpu.vector_store %arg7[%c0_6, %c0_7], %8 {strides = array<i32>} : memref<8x128xbf16, #tpu.memory_space<vmem>>, vector<8x128xbf16>,
    %c0_8 = arith.constant 0 : index
    %c0_9 = arith.constant 0 : index
    %10 = vector.load %arg7[%c0_8, %c0_9] : memref<8x128xbf16, #tpu.memory_space<vmem>>, vector<8x128xbf16>
    %c0_10 = arith.constant 0 : index
    %c0_11 = arith.constant 0 : index
    %11 = vector.load %arg4[%c0_10, %c0_11] : memref<128x128xbf16, #tpu.memory_space<vmem>>, vector<128x128xbf16>
    %cst_12 = arith.constant dense<0.000000e+00> : vector<8x128xf32>
    %12 = tpu.matmul %10, %11, %cst_12 {dimension_numbers = #tpu.dot_dimension_numbers<[1], [0], [0], [1], [0, 0, 1, 1], [], []>} : vector<8x128xbf16>, vector<128x128xbf16>, vector<8x128xf32> -> vector<8x128xf32>
    %c0_13 = arith.constant 0 : index
    %c0_14 = arith.constant 0 : index
    %13 = vector.load %arg5[%c0_13, %c0_14] : memref<1x128xf32, #tpu.memory_space<vmem>>, vector<1x128xf32>
    %14 = vector.broadcast %13 : vector<1x128xf32> to vector<8x128xf32>
    %15 = arith.addf %12, %14 : vector<8x128xf32>
    %c0_15 = arith.constant 0 : index
    %c0_16 = arith.constant 0 : index
    %16 = vector.load %arg6[%c0_15, %c0_16] : memref<8x128xf32, #tpu.memory_space<vmem>>, vector<8x128xf32>
    tpu.vector_store %arg6[%c0_15, %c0_16], %15 {strides = array<i32>} : memref<8x128xf32, #tpu.memory_space<vmem>>, vector<8x128xf32>,
    return
  }
  func.func @transform_0(%arg0: i32) -> (i32, i32) {
    %c0_i32 = arith.constant 0 : i32
    %c0_i32_0 = arith.constant 0 : i32
    return %arg0, %c0_i32 : i32, i32
  }
  func.func @transform_1(%arg0: i32) -> (i32, i32) {
    %c0_i32 = arith.constant 0 : i32
    %c0_i32_0 = arith.constant 0 : i32
    %c0_i32_1 = arith.constant 0 : i32
    return %c0_i32, %c0_i32_0 : i32, i32
  }
  func.func @transform_2(%arg0: i32) -> (i32, i32) {
    %c0_i32 = arith.constant 0 : i32
    %c0_i32_0 = arith.constant 0 : i32
    %c0_i32_1 = arith.constant 0 : i32
    return %c0_i32, %c0_i32_0 : i32, i32
  }
  func.func @transform_3(%arg0: i32) -> (i32, i32) {
    %c0_i32 = arith.constant 0 : i32
    %c0_i32_0 = arith.constant 0 : i32
    %c0_i32_1 = arith.constant 0 : i32
    return %c0_i32, %c0_i32_0 : i32, i32
  }
  func.func @transform_4(%arg0: i32) -> (i32, i32) {
    %c0_i32 = arith.constant 0 : i32
    %c0_i32_0 = arith.constant 0 : i32
    %c0_i32_1 = arith.constant 0 : i32
    return %c0_i32, %c0_i32_0 : i32, i32
  }
  func.func @transform_5(%arg0: i32) -> (i32, i32) {
    %c0_i32 = arith.constant 0 : i32
    %c0_i32_0 = arith.constant 0 : i32
    return %arg0, %c0_i32 : i32, i32
  }
}

</mosaic_0001>

<llo_original>
// kernel: simple_nn_forward.1
$region0: #{simple_nn_forward.1}
  #allocation0 [shape = 'u32[]', space=smem, size = 0x4, offset = 0x4, fixed_abs, tag = 'smem constant byte address 0x4 - core index']
  #allocation1 [shape = 'u32[144,128]{1,0:T(1,128)}', space=vmem, size = 0x12000, scoped, tag = 'internal scratch']
  #allocation2 [shape = 'bf16[8,128]{1,0:T(8,128)(2,1)}', space=vmem, size = 0x800, scoped, tag = 'scratch operand']
  %s0 = inlined_call_operand.vmem [shape: bf16[8,128], index: 0, kind: input, shape index: {}]
  %s1 = inlined_call_operand.vmem [shape: bf16[128,128], index: 1, kind: input, shape index: {}]
  %s2 = inlined_call_operand.vmem [shape: f32[1,128], index: 2, kind: input, shape index: {}]
  %s3 = inlined_call_operand.vmem [shape: bf16[128,128], index: 3, kind: input, shape index: {}]
  %s4 = inlined_call_operand.vmem [shape: f32[1,128], index: 4, kind: input, shape index: {}]
  %s5 = inlined_call_operand.hbm [shape: f32[8,128], index: 5, kind: output, shape index: {}]
  %s6 = sld [smem:[#allocation0]]
  $region30: #{simple_nn_forward.1} parent=0
    _
  %s8 = ssub.s32 1, %s6
  %s9 = scalar_select 0, %s8, %s6
  $region1: #{simple_nn_forward.1} parent=0
    #allocation3 [shape = 'u8[4096]{0}', space=vmem, size = 0x1000, scoped, tag = 'output window, operand 0, single buffered']
    #allocation4 [shape = 's32[1]{0}', space=sflag, size = 0x4, scoped, tag = 'scoped memory for simple_nn_forward.1']
    %10 = vsyncpa [#allocation4], 0
    // Predicated region
    $region2: #{simple_nn_forward.1} parent=1 // pred_check
      _
    $region3: #{simple_nn_forward.1} parent=1 // pred_check_branch
      %12 = sbr.rel (0) target = $region5
    $region4: #{simple_nn_forward.1} parent=1 // pred_region
      _
    $region5: #{simple_nn_forward.1} parent=1 // pred_fallthru
      _
    // Predicated region
    $region6: #{simple_nn_forward.1} parent=1 // pred_check
      _
    $region7: #{simple_nn_forward.1} parent=1 // pred_check_branch
      %14 = sbr.rel (0) target = $region9
    $region8: #{simple_nn_forward.1} parent=1 // pred_region
      _
    $region9: #{simple_nn_forward.1} parent=1 // pred_fallthru
      _
    // Predicated region
    $region10: #{simple_nn_forward.1} parent=1 // pred_check
      _
    $region11: #{simple_nn_forward.1} parent=1 // pred_check_branch
      %16 = sbr.rel (0) target = $region13
    $region12: #{simple_nn_forward.1} parent=1 // pred_region
      _
    $region13: #{simple_nn_forward.1} parent=1 // pred_fallthru
      _
    // Predicated region
    $region14: #{simple_nn_forward.1} parent=1 // pred_check
      _
    $region15: #{simple_nn_forward.1} parent=1 // pred_check_branch
      %18 = sbr.rel (0) target = $region17
    $region16: #{simple_nn_forward.1} parent=1 // pred_region
      _
    $region17: #{simple_nn_forward.1} parent=1 // pred_fallthru
      _
    // Predicated region
    $region18: #{simple_nn_forward.1} parent=1 // pred_check
      _
    $region19: #{simple_nn_forward.1} parent=1 // pred_check_branch
      %20 = sbr.rel (0) target = $region21
    $region20: #{simple_nn_forward.1} parent=1 // pred_region
      _
    $region21: #{simple_nn_forward.1} parent=1 // pred_fallthru
      _
    %v22 = vld [vmem:[%s0] sm:$0xf]
    %v23 = vld [vmem:[%s1] sm:$0xf]
    %v24 = vld [vmem:[%s1 + $0x4] sm:$0xf]
    %v25 = vld [vmem:[%s1 + $0x8] sm:$0xf]
    %v26 = vld [vmem:[%s1 + $0xc] sm:$0xf]
    %v27 = vld [vmem:[%s1 + $0x10] sm:$0xf]
    %v28 = vld [vmem:[%s1 + $0x14] sm:$0xf]
    %v29 = vld [vmem:[%s1 + $0x18] sm:$0xf]
    %v30 = vld [vmem:[%s1 + $0x1c] sm:$0xf]
    %v31 = vld [vmem:[%s1 + $0x20] sm:$0xf]
    %v32 = vld [vmem:[%s1 + $0x24] sm:$0xf]
    %v33 = vld [vmem:[%s1 + $0x28] sm:$0xf]
    %v34 = vld [vmem:[%s1 + $0x2c] sm:$0xf]
    %v35 = vld [vmem:[%s1 + $0x30] sm:$0xf]
    %v36 = vld [vmem:[%s1 + $0x34] sm:$0xf]
    %v37 = vld [vmem:[%s1 + $0x38] sm:$0xf]
    %v38 = vld [vmem:[%s1 + $0x3c] sm:$0xf]
    %v39 = vld [vmem:[%s2] sm:$0x1]
    %v41 = vlaneseq
    %v42 = vshrl.u32 %v41, 7
    %v43 = vsub.s32 0, %v42
    %v44 = vrot.slane %v39, %v43
    %v62 = vunpack.c.l.b16 %v23
    %v63 = vunpack.c.l.b16 %v24
    %v64 = vunpack.c.l.b16 %v25
    %v65 = vunpack.c.l.b16 %v26
    %v66 = vunpack.c.l.b16 %v27
    %v67 = vunpack.c.l.b16 %v28
    %v68 = vunpack.c.l.b16 %v29
    %v69 = vunpack.c.l.b16 %v30
    %v70 = vunpack.c.l.b16 %v31
    %v71 = vunpack.c.l.b16 %v32
    %v72 = vunpack.c.l.b16 %v33
    %v73 = vunpack.c.l.b16 %v34
    %v74 = vunpack.c.l.b16 %v35
    %v75 = vunpack.c.l.b16 %v36
    %v76 = vunpack.c.l.b16 %v37
    %v77 = vunpack.c.l.b16 %v38
    %v78 = vpack.c.b16 %v63, %v62
    %v79 = vpack.c.b16 %v65, %v64
    %v80 = vpack.c.b16 %v67, %v66
    %v81 = vpack.c.b16 %v69, %v68
    %v82 = vpack.c.b16 %v71, %v70
    %v83 = vpack.c.b16 %v73, %v72
    %v84 = vpack.c.b16 %v75, %v74
    %v85 = vpack.c.b16 %v77, %v76
    %94 = vmatprep.subr.bf16.mxu0 0
    %95 = vmatpush1.bf16.msra.mxu0 %v85
    %96 = vmatprep.subr.bf16.mxu0 0
    %97 = vmatpush1.bf16.msra.mxu0 %v84
    %98 = vmatprep.subr.bf16.mxu0 0
    %99 = vmatpush1.bf16.msra.mxu0 %v83
    %100 = vmatprep.subr.bf16.mxu0 0
    %101 = vmatpush1.bf16.msra.mxu0 %v82
    %102 = vmatprep.subr.bf16.mxu0 0
    %103 = vmatpush1.bf16.msra.mxu0 %v81
    %104 = vmatprep.subr.bf16.mxu0 0
    %105 = vmatpush1.bf16.msra.mxu0 %v80
    %106 = vmatprep.subr.bf16.mxu0 0
    %107 = vmatpush1.bf16.msra.mxu0 %v79
    %108 = vmatprep.subr.bf16.mxu0 0
    %109 = vmatpush1.bf16.msra.mxu0 %v78
    %110 = vmatprep.subr.bf16.mxu0 0
    %111 = vmatpush2.bf16.msra.mxu0 0
    %112 = vmatprep.subr.bf16.mxu0 0
    %113 = vmatpush2.bf16.msra.mxu0 0
    %114 = vmatprep.subr.bf16.mxu0 0
    %115 = vmatpush2.bf16.msra.mxu0 0
    %116 = vmatprep.subr.bf16.mxu0 0
    %117 = vmatpush2.bf16.msra.mxu0 0
    %118 = vmatprep.subr.bf16.mxu0 0
    %119 = vmatpush2.bf16.msra.mxu0 0
    %120 = vmatprep.subr.bf16.mxu0 0
    %121 = vmatpush2.bf16.msra.mxu0 0
    %122 = vmatprep.subr.bf16.mxu0 0
    %123 = vmatpush2.bf16.msra.mxu0 0
    %124 = vmatprep.subr.bf16.mxu0 0
    %125 = vmatpush2.bf16.msra.mxu0 0
    %126 = vmatprep.mubr.bf16.mxu0 0
    %127 = vmatmul.mubr.bf16.gmra.mxu0 %v22
    %v128 = vpop.f32.mrf.mxu0
    %v129 = vadd.f32 %v44, %v128
    %v130 = vpop.f32.mrf.mxu0
    %v131 = vpop.f32.mrf.mxu0
    %v132 = vpop.f32.mrf.mxu0
    %133 = vdwg.mxu0
    %v134 = vmax.f32 %v129, 0.0
    %v135 = vpack.c.bf16 %v134, %v134
    %136 = vst [vmem:[#allocation2] sm:$0xf] %v135
    %v137 = vld [vmem:[#allocation2] sm:$0xf]
    %v138 = vld [vmem:[%s3] sm:$0xf]
    %v139 = vld [vmem:[%s3 + $0x4] sm:$0xf]
    %v140 = vld [vmem:[%s3 + $0x8] sm:$0xf]
    %v141 = vld [vmem:[%s3 + $0xc] sm:$0xf]
    %v142 = vld [vmem:[%s3 + $0x10] sm:$0xf]
    %v143 = vld [vmem:[%s3 + $0x14] sm:$0xf]
    %v144 = vld [vmem:[%s3 + $0x18] sm:$0xf]
    %v145 = vld [vmem:[%s3 + $0x1c] sm:$0xf]
    %v146 = vld [vmem:[%s3 + $0x20] sm:$0xf]
    %v147 = vld [vmem:[%s3 + $0x24] sm:$0xf]
    %v148 = vld [vmem:[%s3 + $0x28] sm:$0xf]
    %v149 = vld [vmem:[%s3 + $0x2c] sm:$0xf]
    %v150 = vld [vmem:[%s3 + $0x30] sm:$0xf]
    %v151 = vld [vmem:[%s3 + $0x34] sm:$0xf]
    %v152 = vld [vmem:[%s3 + $0x38] sm:$0xf]
    %v153 = vld [vmem:[%s3 + $0x3c] sm:$0xf]
    %v154 = vld [vmem:[%s4] sm:$0x1]
    %v156 = vlaneseq
    %v157 = vshrl.u32 %v156, 7
    %v158 = vsub.s32 0, %v157
    %v159 = vrot.slane %v154, %v158
    %v177 = vunpack.c.l.b16 %v138
    %v178 = vunpack.c.l.b16 %v139
    %v179 = vunpack.c.l.b16 %v140
    %v180 = vunpack.c.l.b16 %v141
    %v181 = vunpack.c.l.b16 %v142
    %v182 = vunpack.c.l.b16 %v143
    %v183 = vunpack.c.l.b16 %v144
    %v184 = vunpack.c.l.b16 %v145
    %v185 = vunpack.c.l.b16 %v146
    %v186 = vunpack.c.l.b16 %v147
    %v187 = vunpack.c.l.b16 %v148
    %v188 = vunpack.c.l.b16 %v149
    %v189 = vunpack.c.l.b16 %v150
    %v190 = vunpack.c.l.b16 %v151
    %v191 = vunpack.c.l.b16 %v152
    %v192 = vunpack.c.l.b16 %v153
    %v193 = vpack.c.b16 %v178, %v177
    %v194 = vpack.c.b16 %v180, %v179
    %v195 = vpack.c.b16 %v182, %v181
    %v196 = vpack.c.b16 %v184, %v183
    %v197 = vpack.c.b16 %v186, %v185
    %v198 = vpack.c.b16 %v188, %v187
    %v199 = vpack.c.b16 %v190, %v189
    %v200 = vpack.c.b16 %v192, %v191
    %209 = vmatprep.subr.bf16.mxu0 0
    %210 = vmatpush1.bf16.msra.mxu0 %v200
    %211 = vmatprep.subr.bf16.mxu0 0
    %212 = vmatpush1.bf16.msra.mxu0 %v199
    %213 = vmatprep.subr.bf16.mxu0 0
    %214 = vmatpush1.bf16.msra.mxu0 %v198
    %215 = vmatprep.subr.bf16.mxu0 0
    %216 = vmatpush1.bf16.msra.mxu0 %v197
    %217 = vmatprep.subr.bf16.mxu0 0
    %218 = vmatpush1.bf16.msra.mxu0 %v196
    %219 = vmatprep.subr.bf16.mxu0 0
    %220 = vmatpush1.bf16.msra.mxu0 %v195
    %221 = vmatprep.subr.bf16.mxu0 0
    %222 = vmatpush1.bf16.msra.mxu0 %v194
    %223 = vmatprep.subr.bf16.mxu0 0
    %224 = vmatpush1.bf16.msra.mxu0 %v193
    %225 = vmatprep.subr.bf16.mxu0 0
    %226 = vmatpush2.bf16.msra.mxu0 0
    %227 = vmatprep.subr.bf16.mxu0 0
    %228 = vmatpush2.bf16.msra.mxu0 0
    %229 = vmatprep.subr.bf16.mxu0 0
    %230 = vmatpush2.bf16.msra.mxu0 0
    %231 = vmatprep.subr.bf16.mxu0 0
    %232 = vmatpush2.bf16.msra.mxu0 0
    %233 = vmatprep.subr.bf16.mxu0 0
    %234 = vmatpush2.bf16.msra.mxu0 0
    %235 = vmatprep.subr.bf16.mxu0 0
    %236 = vmatpush2.bf16.msra.mxu0 0
    %237 = vmatprep.subr.bf16.mxu0 0
    %238 = vmatpush2.bf16.msra.mxu0 0
    %239 = vmatprep.subr.bf16.mxu0 0
    %240 = vmatpush2.bf16.msra.mxu0 0
    %241 = vmatprep.mubr.bf16.mxu0 0
    %242 = vmatmul.mubr.bf16.gmra.mxu0 %v137
    %v243 = vpop.f32.mrf.mxu0
    %v244 = vadd.f32 %v159, %v243
    %v245 = vpop.f32.mrf.mxu0
    %v246 = vpop.f32.mrf.mxu0
    %v247 = vpop.f32.mrf.mxu0
    %248 = vdwg.mxu0
    %249 = vst [vmem:[#allocation3] sm:$0xff] %v244
    // Predicated region
    $region22: #{simple_nn_forward.1} parent=1 // pred_check
      _
    $region23: #{simple_nn_forward.1} parent=1 // pred_check_branch
      %251 = sbr.rel (0) target = $region25
    $region24: #{simple_nn_forward.1} parent=1 // pred_region
      %s253 = ssub.s32 128, 128
      %254 = vsyncadd [#allocation4], %s253
      %s256 = sshll.u32 [#allocation3], 4
      %s257 = int_to_ptr.vmem [resolvable:$true] %s256
      %259 = dma.vmem_to_hbm [thread:$0]  %s257, 128, %s5, [#allocation4]
    $region25: #{simple_nn_forward.1} parent=1 // pred_fallthru
      _
    // Predicated region
    $region26: #{simple_nn_forward.1} parent=1 // pred_check
      _
    $region27: #{simple_nn_forward.1} parent=1 // pred_check_branch
      %261 = sbr.rel (0) target = $region29
    $region28: #{simple_nn_forward.1} parent=1 // pred_region
      %262 = dma.done [#allocation4], 128
    $region29: #{simple_nn_forward.1} parent=1 // pred_fallthru
      _
    %263 = vsyncpa [#allocation4], 1

</llo_original>
